<compile_context>
chip_gen: v6e
topology: v6e:2x2x1
jax: 0.10.0
libtpu: 0.0.40
codegen_flags: <defaults>
</compile_context>

<pallas_src>
import functools

import jax
import jax.numpy as jnp
from jax import lax
from jax.experimental import pallas as pl
from jax.experimental.pallas import tpu as pltpu


def _round_up(x: int, m: int) -> int:
    return ((x + m - 1) // m) * m


def _softplus(p):
    # Numerically stable softplus: max(p, 0) + log1p(exp(-|p|)).
    return jnp.maximum(p, 0.0) + jnp.log1p(jnp.exp(-jnp.abs(p)))


def _log_sigma(p, sigma):
    # Stable log(softplus(p)): for p << 0, softplus(p) ~= exp(p) so log(.) ~= p.
    # Avoids log(0) = -inf when softplus underflows in f32.
    return jnp.where(p > -15.0, jnp.log(jnp.maximum(sigma, 1e-38)), p)


# ----------------------------------------------------------------------------------
# Fused kernel: single batch tile.  grid = (Nj, Nk), j 'parallel', k 'arbitrary'.
# ----------------------------------------------------------------------------------
def _fused_kernel(x_ref, wmu_ref, wp_ref, epsw_ref, bmu_ref, bp_ref, epsb_ref,
                  z_ref, klw_ref, klb_ref, acc_ref,
                  *, in_features, tk, pad_rows, dot_dtype):
    k = pl.program_id(1)
    nk = pl.num_programs(1)

    # Reparameterize this (tk, tn) weight tile (softplus runs exactly once per element).
    wp = wp_ref[...]
    sigma_w = _softplus(wp)
    epsw = epsw_ref[...]
    w = wmu_ref[...] + epsw * sigma_w

    # Once per output tile (k == 0): reparameterize the bias, fold it into the
    # accumulator init (removes the separate bias-add in the finalize path), emit the
    # bias-KL per-column partials and zero this j's weight-KL partial row.
    @pl.when(k == 0)
    def _():
        bp = bp_ref[...]
        sigma_b = _softplus(bp)
        epsb = epsb_ref[...]
        b = bmu_ref[...] + epsb * sigma_b                      # (1, tn)
        acc_ref[...] = jnp.broadcast_to(b, acc_ref.shape)
        klb_ref[...] = (0.5 * b * b - 0.5 * epsb * epsb
                        - _log_sigma(bp, sigma_b))[None]
        klw_ref[...] = jnp.zeros_like(klw_ref)

    # MXU accumulation over K (f32 accumulator).
    # TODO(synk): dot_dtype=jnp.bfloat16 gives near-MXU-peak on v5e/v6e/v7x; kept f32
    # by default to preserve the reference module's numerics.
    acc_ref[...] += jnp.dot(x_ref[...].astype(dot_dtype), w.astype(dot_dtype),
                            preferred_element_type=jnp.float32)

    @pl.when(k == nk - 1)
    def _():
        z_ref[...] = acc_ref[...].astype(z_ref.dtype)

    # Weight KL per-column partial sums, accumulated into this j's private output row.
    # Column padding is dropped in the wrapper; row padding is masked only on the
    # border K tile (trace-time gated), so interior tiles pay no iota/select cost.
    term = 0.5 * w * w - 0.5 * epsw * epsw - _log_sigma(wp, sigma_w)
    if pad_rows:
        @pl.when(k == nk - 1)
        def _():
            row = lax.broadcasted_iota(jnp.int32, term.shape, 0) + k * tk
            masked = jnp.where(row < in_features, term, 0.0)
            klw_ref[...] += jnp.sum(masked, axis=0, keepdims=True)[None]

        @pl.when(k < nk - 1)
        def _():
            klw_ref[...] += jnp.sum(term, axis=0, keepdims=True)[None]
    else:
        klw_ref[...] += jnp.sum(term, axis=0, keepdims=True)[None]


# ----------------------------------------------------------------------------------
# Split path, kernel A: materialize w and weight-KL partials (elementwise, parallel).
# ----------------------------------------------------------------------------------
def _reparam_kl_kernel(wmu_ref, wp_ref, epsw_ref, w_ref, klw_ref,
                       *, in_features, tk, pad_rows):
    wp = wp_ref[...]
    sigma = _softplus(wp)
    epsw = epsw_ref[...]
    w = wmu_ref[...] + epsw * sigma
    w_ref[...] = w

    term = 0.5 * w * w - 0.5 * epsw * epsw - _log_sigma(wp, sigma)
    if pad_rows:
        # This pass is HBM-bound (4 f32 streams); the iota/select VALU cost is hidden.
        row = lax.broadcasted_iota(jnp.int32, term.shape, 0) + pl.program_id(0) * tk
        term = jnp.where(row < in_features, term, 0.0)
    klw_ref[...] = jnp.sum(term, axis=0, keepdims=True)[None, None]


# ----------------------------------------------------------------------------------
# Split path, kernel B: plain tiled matmul with the bias folded into the acc init.
# ----------------------------------------------------------------------------------
def _matmul_bias_kernel(x_ref, w_ref, b_ref, z_ref, acc_ref, *, dot_dtype):
    k = pl.program_id(2)

    @pl.when(k == 0)
    def _():
        acc_ref[...] = jnp.broadcast_to(b_ref[...], acc_ref.shape)

    acc_ref[...] += jnp.dot(x_ref[...].astype(dot_dtype), w_ref[...].astype(dot_dtype),
                            preferred_element_type=jnp.float32)

    @pl.when(k == pl.num_programs(2) - 1)
    def _():
        z_ref[...] = acc_ref[...].astype(z_ref.dtype)


# Scoped-VMEM budget: actual double-buffered working set at (1024, 512, 512) f32 tiles
# is ~16 MiB; 48 MiB leaves headroom yet stays below v7x's 64 MiB physical VMEM.
_VMEM_LIMIT = 48 * 1024 * 1024


def linear_variational_forward(x, w_mu, w_p, eps_w, b_mu, b_p, eps_b,
                               *, tm_max=1024, tn_max=512, tk_max=512,
                               dot_dtype=jnp.float32):
    """Fused forward of LinearVariational.  Returns (z, kl_w, kl_b)."""
    B, I = x.shape
    O = w_mu.shape[1]

    # Lane-dense tiles (K/N multiples of 128, M multiple of 8); 512 on the big dims
    # keeps per-step pipeline overhead negligible and sits near the HBM roofline.
    tn = min(tn_max, _round_up(O, 128))
    tk = min(tk_max, _round_up(I, 128))
    Op, Ip = _round_up(O, tn), _round_up(I, tk)
    pad_rows = Ip != I
    nj, nk = Op // tn, Ip // tk

    pad2 = lambda a, r, c: jnp.pad(a, ((0, r - a.shape[0]), (0, c - a.shape[1])))
    wmup = pad2(w_mu, Ip, Op)
    wpp = pad2(w_p, Ip, Op)
    epswp = pad2(eps_w, Ip, Op)

    Bp_single = _round_up(B, 8)
    if Bp_single <= tm_max:
        # ---------------- fused single-batch-tile path --------------------------
        tm = Bp_single
        xp = pad2(x, tm, Ip)
        bmup = pad2(b_mu.reshape(1, O), 1, Op)
        bpp = pad2(b_p.reshape(1, O), 1, Op)
        epsbp = pad2(eps_b.reshape(1, O), 1, Op)

        kernel = functools.partial(_fused_kernel, in_features=I, tk=tk,
                                   pad_rows=pad_rows, dot_dtype=dot_dtype)
        wspec = pl.BlockSpec((tk, tn), lambda j, k: (k, j))
        bspec = pl.BlockSpec((1, tn), lambda j, k: (0, j))
        klspec = pl.BlockSpec((1, 1, tn), lambda j, k: (j, 0, 0))
        # TODO(synk): on v5e/v6e, pipeline_mode=pl.Buffered(3) on the x/w streams can
        # hide exposed DMA latency; default depth-2 kept for the v7x VMEM budget.
        z, klw, klb = pl.pallas_call(
            kernel,
            out_shape=(jax.ShapeDtypeStruct((tm, Op), jnp.float32),
                       jax.ShapeDtypeStruct((nj, 1, tn), jnp.float32),
                       jax.ShapeDtypeStruct((nj, 1, tn), jnp.float32)),
            grid=(nj, nk),
            in_specs=[pl.BlockSpec((tm, tk), lambda j, k: (0, k)),
                      wspec, wspec, wspec, bspec, bspec, bspec],
            out_specs=(pl.BlockSpec((tm, tn), lambda j, k: (0, j)), klspec, klspec),
            scratch_shapes=[pltpu.VMEM((tm, tn), jnp.float32)],
            compiler_params=pltpu.CompilerParams(
                dimension_semantics=("parallel", "arbitrary"),
                vmem_limit_bytes=_VMEM_LIMIT),
        )(xp, wmup, wpp, epswp, bmup, bpp, epsbp)

        kl_w = jnp.sum(klw.reshape(Op)[:O]) / (I * O)
        kl_b = jnp.sum(klb.reshape(Op)[:O]) / O
        return z[:B, :O], kl_w, kl_b

    # ---------------- split path: multiple batch tiles --------------------------
    # (a) Materialize w once + weight-KL partials (avoids re-reading 3 weight streams
    #     and re-running softplus for every batch tile).
    kernel_a = functools.partial(_reparam_kl_kernel, in_features=I, tk=tk,
                                 pad_rows=pad_rows)
    wspec_a = pl.BlockSpec((tk, tn), lambda kk, jj: (kk, jj))
    # TODO(synk): storing w in bf16 here would halve the materialized-w HBM traffic
    # and feed the MXU at native bf16; kept f32 to match the reference numerics.
    w_mat, klw = pl.pallas_call(
        kernel_a,
        out_shape=(jax.ShapeDtypeStruct((Ip, Op), jnp.float32),
                   jax.ShapeDtypeStruct((nk, nj, 1, tn), jnp.float32)),
        grid=(nk, nj),
        in_specs=[wspec_a, wspec_a, wspec_a],
        out_specs=(wspec_a,
                   pl.BlockSpec((1, 1, 1, tn), lambda kk, jj: (kk, jj, 0, 0))),
        compiler_params=pltpu.CompilerParams(
            dimension_semantics=("parallel", "parallel"),
            vmem_limit_bytes=_VMEM_LIMIT),
    )(wmup, wpp, epswp)
    kl_w = jnp.sum(jnp.sum(klw, axis=0).reshape(Op)[:O]) / (I * O)

    # Bias reparameterization + KL: O(out_features) elementwise work -> plain XLA,
    # keeping the matmul kernel EUP-free and safe to shard across TensorCores.
    sigma_b = _softplus(b_p)
    b_vec = b_mu + eps_b * sigma_b
    kl_b = jnp.mean(0.5 * b_vec * b_vec - 0.5 * eps_b * eps_b
                    - _log_sigma(b_p, sigma_b))
    b_pad = pad2(b_vec.reshape(1, O), 1, Op)

    # (b) Clean parallel matmul over the single materialized w.
    tm = min(tm_max, _round_up(B, 8))
    Bp = _round_up(B, tm)
    xp = pad2(x, Bp, Ip)
    kernel_b = functools.partial(_matmul_bias_kernel, dot_dtype=dot_dtype)
    z = pl.pallas_call(
        kernel_b,
        out_shape=jax.ShapeDtypeStruct((Bp, Op), jnp.float32),
        grid=(Bp // tm, nj, nk),
        in_specs=[pl.BlockSpec((tm, tk), lambda i, j, k: (i, k)),
                  pl.BlockSpec((tk, tn), lambda i, j, k: (k, j)),
                  pl.BlockSpec((1, tn), lambda i, j, k: (0, j))],
        out_specs=pl.BlockSpec((tm, tn), lambda i, j, k: (i, j)),
        scratch_shapes=[pltpu.VMEM((tm, tn), jnp.float32)],
        compiler_params=pltpu.CompilerParams(
            dimension_semantics=("parallel", "parallel", "arbitrary"),
            vmem_limit_bytes=_VMEM_LIMIT),
    )(xp, w_mat, b_pad)
    return z[:B, :O], kl_w, kl_b


if __name__ == "__main__":
    root = jax.random.PRNGKey(0)

    def make_inputs(key, B, I, O):
        k_x, k_wmu, k_wp, k_ew, k_eb = jax.random.split(key, 5)
        x = jax.random.normal(k_x, (B, I), dtype=jnp.float32)
        # Module __init__: w_mu, w_p ~ N(0, 0.001^2); b_mu = b_p = 0.
        w_mu = 0.001 * jax.random.normal(k_wmu, (I, O), dtype=jnp.float32)
        w_p = 0.001 * jax.random.normal(k_wp, (I, O), dtype=jnp.float32)
        b_mu = jnp.zeros((O,), jnp.float32)
        b_p = jnp.zeros((O,), jnp.float32)
        # Reparameterization noise (torch.randn_like equivalent, fixed seed here).
        eps_w = jax.random.normal(k_ew, (I, O), dtype=jnp.float32)
        eps_b = jax.random.normal(k_eb, (O,), dtype=jnp.float32)
        return x, w_mu, w_p, eps_w, b_mu, b_p, eps_b

    def reference(x, w_mu, w_p, eps_w, b_mu, b_p, eps_b):
        sigma_w = jnp.log1p(jnp.exp(w_p))
        w = w_mu + eps_w * sigma_w
        sigma_b = jnp.log1p(jnp.exp(b_p))
        b = b_mu + eps_b * sigma_b
        z = jnp.matmul(x, w, precision=lax.Precision.HIGHEST) + b
        half_log_2pi = 0.5 * jnp.log(2.0 * jnp.pi)

        def kl(val, mu, sigma):
            log_prior = -0.5 * val * val - half_log_2pi
            log_p_q = (-0.5 * jnp.square((val - mu) / sigma)
                       - jnp.log(sigma) - half_log_2pi)
            return jnp.mean(log_p_q - log_prior)

        return z, kl(w, w_mu, sigma_w), kl(b, b_mu, sigma_b)

    # (name, batch, in_features, out_features, forward kwargs)
    cases = [
        ("fused_single_tile", 8, 32, 32, {}),
        ("fused_multi_tile_padded", 24, 640, 520, {}),
        ("split_weight_pass", 32, 96, 48, {"tm_max": 8}),  # forces the 2-kernel path
    ]

    accumulated_kl_div = 0.0  # mirrors parent.accumulated_kl_div bookkeeping
    for idx, (name, B, I, O, kwargs) in enumerate(cases):
        inputs = make_inputs(jax.random.fold_in(root, idx), B, I, O)
        z, kl_w, kl_b = linear_variational_forward(*inputs, **kwargs)
        jax.block_until_ready((z, kl_w, kl_b))
        accumulated_kl_div += float(kl_w) + float(kl_b)

        z_ref, klw_ref, klb_ref = reference(*inputs)
        assert jnp.allclose(z, z_ref, atol=2e-4, rtol=2e-4), f"{name}: z mismatch"
        assert jnp.allclose(kl_w, klw_ref, atol=1e-5, rtol=1e-3), f"{name}: kl_w mismatch"
        assert jnp.allclose(kl_b, klb_ref, atol=1e-5, rtol=1e-3), f"{name}: kl_b mismatch"

    print("KERNEL_OK")
</pallas_src>

<mosaic_0001>
module attributes {stable_mosaic.version = 11 : i64} {
  func.func @_fused_kernel(%arg0: i32, %arg1: i32, %arg2: memref<8x128xf32, #tpu.memory_space<vmem>>, %arg3: memref<128x128xf32, #tpu.memory_space<vmem>>, %arg4: memref<128x128xf32, #tpu.memory_space<vmem>>, %arg5: memref<128x128xf32, #tpu.memory_space<vmem>>, %arg6: memref<1x128xf32, #tpu.memory_space<vmem>>, %arg7: memref<1x128xf32, #tpu.memory_space<vmem>>, %arg8: memref<1x128xf32, #tpu.memory_space<vmem>>, %arg9: memref<8x128xf32, #tpu.memory_space<vmem>>, %arg10: memref<1x1x128xf32, #tpu.memory_space<vmem>>, %arg11: memref<1x1x128xf32, #tpu.memory_space<vmem>>, %arg12: memref<8x128xf32, #tpu.memory_space<vmem>>) attributes {dimension_semantics = [#tpu.dimension_semantics<parallel>, #tpu.dimension_semantics<arbitrary>], iteration_bounds = array<i64: 1, 1>, scalar_prefetch = 0 : i64, scratch_operands = 1 : i64, tpu.core_type = #tpu.core_type<tc>, window_params = [{transform_indices = @transform_0, window_bounds = array<i64: 8, 128>}, {transform_indices = @transform_1, window_bounds = array<i64: 128, 128>}, {transform_indices = @transform_2, window_bounds = array<i64: 128, 128>}, {transform_indices = @transform_3, window_bounds = array<i64: 128, 128>}, {transform_indices = @transform_4, window_bounds = array<i64: 1, 128>}, {transform_indices = @transform_5, window_bounds = array<i64: 1, 128>}, {transform_indices = @transform_6, window_bounds = array<i64: 1, 128>}, {transform_indices = @transform_7, window_bounds = array<i64: 8, 128>}, {transform_indices = @transform_8, window_bounds = array<i64: 1, 1, 128>}, {transform_indices = @transform_9, window_bounds = array<i64: 1, 1, 128>}]} {
    %c0 = arith.constant 0 : index
    %c0_0 = arith.constant 0 : index
    %0 = vector.load %arg4[%c0, %c0_0] : memref<128x128xf32, #tpu.memory_space<vmem>>, vector<128x128xf32>
    %cst = arith.constant 0.000000e+00 : f32
    %1 = vector.broadcast %cst : f32 to vector<128x128xf32>
    %2 = arith.maximumf %0, %1 : vector<128x128xf32>
    %3 = math.absf %0 : vector<128x128xf32>
    %cst_1 = arith.constant 0.000000e+00 : f32
    %4 = vector.broadcast %cst_1 : f32 to vector<128x128xf32>
    %5 = arith.subf %4, %3 : vector<128x128xf32>
    %6 = math.exp %5 : vector<128x128xf32>
    %7 = math.log1p %6 : vector<128x128xf32>
    %8 = arith.addf %2, %7 : vector<128x128xf32>
    %c0_2 = arith.constant 0 : index
    %c0_3 = arith.constant 0 : index
    %9 = vector.load %arg5[%c0_2, %c0_3] : memref<128x128xf32, #tpu.memory_space<vmem>>, vector<128x128xf32>
    %c0_4 = arith.constant 0 : index
    %c0_5 = arith.constant 0 : index
    %10 = vector.load %arg3[%c0_4, %c0_5] : memref<128x128xf32, #tpu.memory_space<vmem>>, vector<128x128xf32>
    %11 = arith.mulf %9, %8 : vector<128x128xf32>
    %12 = arith.addf %10, %11 : vector<128x128xf32>
    %c0_i32 = arith.constant 0 : i32
    %13 = arith.cmpi eq, %arg1, %c0_i32 : i32
    %14 = arith.extui %13 : i1 to i32
    %c0_i32_6 = arith.constant 0 : i32
    %15 = arith.cmpi ne, %14, %c0_i32_6 : i32
    scf.if %15 {
      %c0_24 = arith.constant 0 : index
      %c0_25 = arith.constant 0 : index
      %44 = vector.load %arg7[%c0_24, %c0_25] : memref<1x128xf32, #tpu.memory_space<vmem>>, vector<1x128xf32>
      %cst_26 = arith.constant 0.000000e+00 : f32
      %45 = vector.broadcast %cst_26 : f32 to vector<1x128xf32>
      %46 = arith.maximumf %44, %45 : vector<1x128xf32>
      %47 = math.absf %44 : vector<1x128xf32>
      %cst_27 = arith.constant 0.000000e+00 : f32
      %48 = vector.broadcast %cst_27 : f32 to vector<1x128xf32>
      %49 = arith.subf %48, %47 : vector<1x128xf32>
      %50 = math.exp %49 : vector<1x128xf32>
      %51 = math.log1p %50 : vector<1x128xf32>
      %52 = arith.addf %46, %51 : vector<1x128xf32>
      %c0_28 = arith.constant 0 : index
      %c0_29 = arith.constant 0 : index
      %53 = vector.load %arg8[%c0_28, %c0_29] : memref<1x128xf32, #tpu.memory_space<vmem>>, vector<1x128xf32>
      %c0_30 = arith.constant 0 : index
      %c0_31 = arith.constant 0 : index
      %54 = vector.load %arg6[%c0_30, %c0_31] : memref<1x128xf32, #tpu.memory_space<vmem>>, vector<1x128xf32>
      %55 = arith.mulf %53, %52 : vector<1x128xf32>
      %56 = arith.addf %54, %55 : vector<1x128xf32>
      %57 = vector.shape_cast %56 : vector<1x128xf32> to vector<1x128xf32>
      %58 = vector.broadcast %57 : vector<1x128xf32> to vector<8x128xf32>
      %c0_32 = arith.constant 0 : index
      %c0_33 = arith.constant 0 : index
      %59 = vector.load %arg12[%c0_32, %c0_33] : memref<8x128xf32, #tpu.memory_space<vmem>>, vector<8x128xf32>
      tpu.vector_store %arg12[%c0_32, %c0_33], %58 {strides = array<i32>} : memref<8x128xf32, #tpu.memory_space<vmem>>, vector<8x128xf32>,
      %cst_34 = arith.constant 5.000000e-01 : f32
      %60 = vector.broadcast %cst_34 : f32 to vector<1x128xf32>
      %61 = arith.mulf %60, %56 : vector<1x128xf32>
      %62 = arith.mulf %61, %56 : vector<1x128xf32>
      %cst_35 = arith.constant 5.000000e-01 : f32
      %63 = vector.broadcast %cst_35 : f32 to vector<1x128xf32>
      %64 = arith.mulf %63, %53 : vector<1x128xf32>
      %65 = arith.mulf %64, %53 : vector<1x128xf32>
      %66 = arith.subf %62, %65 : vector<1x128xf32>
      %cst_36 = arith.constant -1.500000e+01 : f32
      %67 = vector.broadcast %cst_36 : f32 to vector<1x128xf32>
      %68 = arith.cmpf ogt, %44, %67 : vector<1x128xf32>
      %cst_37 = arith.constant 9.99999935E-39 : f32
      %69 = vector.broadcast %cst_37 : f32 to vector<1x128xf32>
      %70 = arith.maximumf %52, %69 : vector<1x128xf32>
      %71 = math.log %70 : vector<1x128xf32>
      %72 = arith.select %68, %71, %44 : vector<1x128xi1>, vector<1x128xf32>
      %73 = arith.subf %66, %72 : vector<1x128xf32>
      %74 = vector.shape_cast %73 : vector<1x128xf32> to vector<1x1x128xf32>
      %c0_38 = arith.constant 0 : index
      %c0_39 = arith.constant 0 : index
      %c0_40 = arith.constant 0 : index
      %75 = vector.load %arg11[%c0_38, %c0_39, %c0_40] : memref<1x1x128xf32, #tpu.memory_space<vmem>>, vector<1x1x128xf32>
      tpu.vector_store %arg11[%c0_38, %c0_39, %c0_40], %74 {strides = array<i32>} : memref<1x1x128xf32, #tpu.memory_space<vmem>>, vector<1x1x128xf32>,
      %cst_41 = arith.constant 0.000000e+00 : f32
      %76 = vector.broadcast %cst_41 : f32 to vector<1x1x128xf32>
      %c0_42 = arith.constant 0 : index
      %c0_43 = arith.constant 0 : index
      %c0_44 = arith.constant 0 : index
      %77 = vector.load %arg10[%c0_42, %c0_43, %c0_44] : memref<1x1x128xf32, #tpu.memory_space<vmem>>, vector<1x1x128xf32>
      tpu.vector_store %arg10[%c0_42, %c0_43, %c0_44], %76 {strides = array<i32>} : memref<1x1x128xf32, #tpu.memory_space<vmem>>, vector<1x1x128xf32>,
    } else {
    }
    %c0_7 = arith.constant 0 : index
    %c0_8 = arith.constant 0 : index
    %16 = vector.load %arg12[%c0_7, %c0_8] : memref<8x128xf32, #tpu.memory_space<vmem>>, vector<8x128xf32>
    %c0_9 = arith.constant 0 : index
    %c0_10 = arith.constant 0 : index
    %17 = vector.load %arg2[%c0_9, %c0_10] : memref<8x128xf32, #tpu.memory_space<vmem>>, vector<8x128xf32>
    %cst_11 = arith.constant dense<0.000000e+00> : vector<8x128xf32>
    %18 = tpu.matmul %17, %12, %cst_11 {dimension_numbers = #tpu.dot_dimension_numbers<[1], [0], [0], [1], [0, 0, 1, 1], [], []>} : vector<8x128xf32>, vector<128x128xf32>, vector<8x128xf32> -> vector<8x128xf32>
    %19 = arith.addf %16, %18 : vector<8x128xf32>
    %c0_12 = arith.constant 0 : index
    %c0_13 = arith.constant 0 : index
    %20 = vector.load %arg12[%c0_12, %c0_13] : memref<8x128xf32, #tpu.memory_space<vmem>>, vector<8x128xf32>
    tpu.vector_store %arg12[%c0_12, %c0_13], %19 {strides = array<i32>} : memref<8x128xf32, #tpu.memory_space<vmem>>, vector<8x128xf32>,
    %c0_i32_14 = arith.constant 0 : i32
    %21 = arith.cmpi eq, %arg1, %c0_i32_14 : i32
    %22 = arith.extui %21 : i1 to i32
    %c0_i32_15 = arith.constant 0 : i32
    %23 = arith.cmpi ne, %22, %c0_i32_15 : i32
    scf.if %23 {
      %c0_24 = arith.constant 0 : index
      %c0_25 = arith.constant 0 : index
      %44 = vector.load %arg12[%c0_24, %c0_25] : memref<8x128xf32, #tpu.memory_space<vmem>>, vector<8x128xf32>
      %c0_26 = arith.constant 0 : index
      %c0_27 = arith.constant 0 : index
      %45 = vector.load %arg9[%c0_26, %c0_27] : memref<8x128xf32, #tpu.memory_space<vmem>>, vector<8x128xf32>
      tpu.vector_store %arg9[%c0_26, %c0_27], %44 {strides = array<i32>} : memref<8x128xf32, #tpu.memory_space<vmem>>, vector<8x128xf32>,
    } else {
    }
    %cst_16 = arith.constant 5.000000e-01 : f32
    %24 = vector.broadcast %cst_16 : f32 to vector<128x128xf32>
    %25 = arith.mulf %24, %12 : vector<128x128xf32>
    %26 = arith.mulf %25, %12 : vector<128x128xf32>
    %cst_17 = arith.constant 5.000000e-01 : f32
    %27 = vector.broadcast %cst_17 : f32 to vector<128x128xf32>
    %28 = arith.mulf %27, %9 : vector<128x128xf32>
    %29 = arith.mulf %28, %9 : vector<128x128xf32>
    %30 = arith.subf %26, %29 : vector<128x128xf32>
    %cst_18 = arith.constant -1.500000e+01 : f32
    %31 = vector.broadcast %cst_18 : f32 to vector<128x128xf32>
    %32 = arith.cmpf ogt, %0, %31 : vector<128x128xf32>
    %cst_19 = arith.constant 9.99999935E-39 : f32
    %33 = vector.broadcast %cst_19 : f32 to vector<128x128xf32>
    %34 = arith.maximumf %8, %33 : vector<128x128xf32>
    %35 = math.log %34 : vector<128x128xf32>
    %36 = arith.select %32, %35, %0 : vector<128x128xi1>, vector<128x128xf32>
    %37 = arith.subf %30, %36 : vector<128x128xf32>
    %c0_i32_20 = arith.constant 0 : i32
    %38 = arith.cmpi eq, %arg1, %c0_i32_20 : i32
    %39 = arith.extui %38 : i1 to i32
    %c0_i32_21 = arith.constant 0 : i32
    %40 = arith.cmpi ne, %39, %c0_i32_21 : i32
    scf.if %40 {
      %44 = tpu.iota {dimensions = array<i32: 0>} : vector<128x128xi32>
      %c128_i32 = arith.constant 128 : i32
      %45 = arith.muli %arg1, %c128_i32 : i32
      %46 = vector.broadcast %45 : i32 to vector<128x128xi32>
      %47 = arith.addi %44, %46 : vector<128x128xi32>
      %c32_i32 = arith.constant 32 : i32
      %48 = vector.broadcast %c32_i32 : i32 to vector<128x128xi32>
      %49 = arith.cmpi slt, %47, %48 : vector<128x128xi32>
      %cst_24 = arith.constant 0.000000e+00 : f32
      %50 = vector.broadcast %cst_24 : f32 to vector<128x128xf32>
      %51 = arith.select %49, %37, %50 : vector<128x128xi1>, vector<128x128xf32>
      %c0_25 = arith.constant 0 : index
      %c0_26 = arith.constant 0 : index
      %c0_27 = arith.constant 0 : index
      %52 = vector.load %arg10[%c0_25, %c0_26, %c0_27] : memref<1x1x128xf32, #tpu.memory_space<vmem>>, vector<1x1x128xf32>
      %cst_28 = arith.constant dense<0.000000e+00> : vector<128xf32>
      %53 = vector.multi_reduction <add>, %51, %cst_28 [0] : vector<128x128xf32> to vector<128xf32>
      %54 = vector.shape_cast %53 : vector<128xf32> to vector<1x128xf32>
      %55 = vector.shape_cast %54 : vector<1x128xf32> to vector<1x1x128xf32>
      %56 = arith.addf %52, %55 : vector<1x1x128xf32>
      %c0_29 = arith.constant 0 : index
      %c0_30 = arith.constant 0 : index
      %c0_31 = arith.constant 0 : index
      %57 = vector.load %arg10[%c0_29, %c0_30, %c0_31] : memref<1x1x128xf32, #tpu.memory_space<vmem>>, vector<1x1x128xf32>
      tpu.vector_store %arg10[%c0_29, %c0_30, %c0_31], %56 {strides = array<i32>} : memref<1x1x128xf32, #tpu.memory_space<vmem>>, vector<1x1x128xf32>,
    } else {
    }
    %c0_i32_22 = arith.constant 0 : i32
    %41 = arith.cmpi slt, %arg1, %c0_i32_22 : i32
    %42 = arith.extui %41 : i1 to i32
    %c0_i32_23 = arith.constant 0 : i32
    %43 = arith.cmpi ne, %42, %c0_i32_23 : i32
    scf.if %43 {
      %c0_24 = arith.constant 0 : index
      %c0_25 = arith.constant 0 : index
      %c0_26 = arith.constant 0 : index
      %44 = vector.load %arg10[%c0_24, %c0_25, %c0_26] : memref<1x1x128xf32, #tpu.memory_space<vmem>>, vector<1x1x128xf32>
      %cst_27 = arith.constant dense<0.000000e+00> : vector<128xf32>
      %45 = vector.multi_reduction <add>, %37, %cst_27 [0] : vector<128x128xf32> to vector<128xf32>
      %46 = vector.shape_cast %45 : vector<128xf32> to vector<1x128xf32>
      %47 = vector.shape_cast %46 : vector<1x128xf32> to vector<1x1x128xf32>
      %48 = arith.addf %44, %47 : vector<1x1x128xf32>
      %c0_28 = arith.constant 0 : index
      %c0_29 = arith.constant 0 : index
      %c0_30 = arith.constant 0 : index
      %49 = vector.load %arg10[%c0_28, %c0_29, %c0_30] : memref<1x1x128xf32, #tpu.memory_space<vmem>>, vector<1x1x128xf32>
      tpu.vector_store %arg10[%c0_28, %c0_29, %c0_30], %48 {strides = array<i32>} : memref<1x1x128xf32, #tpu.memory_space<vmem>>, vector<1x1x128xf32>,
    } else {
    }
    return
  }
  func.func @transform_0(%arg0: i32, %arg1: i32) -> (i32, i32) {
    %c0_i32 = arith.constant 0 : i32
    %c0_i32_0 = arith.constant 0 : i32
    return %c0_i32, %arg1 : i32, i32
  }
  func.func @transform_1(%arg0: i32, %arg1: i32) -> (i32, i32) {
    %c0_i32 = arith.constant 0 : i32
    return %arg1, %arg0 : i32, i32
  }
  func.func @transform_2(%arg0: i32, %arg1: i32) -> (i32, i32) {
    %c0_i32 = arith.constant 0 : i32
    return %arg1, %arg0 : i32, i32
  }
  func.func @transform_3(%arg0: i32, %arg1: i32) -> (i32, i32) {
    %c0_i32 = arith.constant 0 : i32
    return %arg1, %arg0 : i32, i32
  }
  func.func @transform_4(%arg0: i32, %arg1: i32) -> (i32, i32) {
    %c0_i32 = arith.constant 0 : i32
    %c0_i32_0 = arith.constant 0 : i32
    return %c0_i32, %arg0 : i32, i32
  }
  func.func @transform_5(%arg0: i32, %arg1: i32) -> (i32, i32) {
    %c0_i32 = arith.constant 0 : i32
    %c0_i32_0 = arith.constant 0 : i32
    return %c0_i32, %arg0 : i32, i32
  }
  func.func @transform_6(%arg0: i32, %arg1: i32) -> (i32, i32) {
    %c0_i32 = arith.constant 0 : i32
    %c0_i32_0 = arith.constant 0 : i32
    return %c0_i32, %arg0 : i32, i32
  }
  func.func @transform_7(%arg0: i32, %arg1: i32) -> (i32, i32) {
    %c0_i32 = arith.constant 0 : i32
    %c0_i32_0 = arith.constant 0 : i32
    return %c0_i32, %arg0 : i32, i32
  }
  func.func @transform_8(%arg0: i32, %arg1: i32) -> (i32, i32, i32) {
    %c0_i32 = arith.constant 0 : i32
    %c0_i32_0 = arith.constant 0 : i32
    %c0_i32_1 = arith.constant 0 : i32
    return %arg0, %c0_i32, %c0_i32_0 : i32, i32, i32
  }
  func.func @transform_9(%arg0: i32, %arg1: i32) -> (i32, i32, i32) {
    %c0_i32 = arith.constant 0 : i32
    %c0_i32_0 = arith.constant 0 : i32
    %c0_i32_1 = arith.constant 0 : i32
    return %arg0, %c0_i32, %c0_i32_0 : i32, i32, i32
  }
}

</mosaic_0001>

<llo_original>
// kernel: tpu_custom_call.1
$region0: #{tpu_custom_call.1}
  #allocation0 [shape = 'u32[]', space=smem, size = 0x4, offset = 0x4, fixed_abs, tag = 'smem constant byte address 0x4 - core index']
  #allocation1 [shape = 'u32[144,128]{1,0:T(1,128)}', space=vmem, size = 0x12000, scoped, tag = 'internal scratch']
  #allocation2 [shape = 'f32[8,128]{1,0:T(8,128)}', space=vmem, size = 0x1000, scoped, tag = 'scratch operand']
  %s0 = inlined_call_operand.hbm [shape: f32[8,128], index: 0, kind: input, shape index: {}]
  %s1 = inlined_call_operand.hbm [shape: f32[128,128], index: 1, kind: input, shape index: {}]
  %s2 = inlined_call_operand.hbm [shape: f32[128,128], index: 2, kind: input, shape index: {}]
  %s3 = inlined_call_operand.hbm [shape: f32[128,128], index: 3, kind: input, shape index: {}]
  %s4 = inlined_call_operand.vmem [shape: f32[1,128], index: 4, kind: input, shape index: {}]
  %s5 = inlined_call_operand.vmem [shape: f32[1,128], index: 5, kind: input, shape index: {}]
  %s6 = inlined_call_operand.vmem [shape: f32[1,128], index: 6, kind: input, shape index: {}]
  %s7 = inlined_call_operand.hbm [shape: f32[8,128], index: 7, kind: output, shape index: {0}]
  %s8 = inlined_call_operand.hbm [shape: f32[1,1,128], index: 8, kind: output, shape index: {1}]
  %s9 = inlined_call_operand.hbm [shape: f32[1,1,128], index: 9, kind: output, shape index: {2}]
  %10 = xla_tuple %s7, %s8, %s9
  %s11 = sld [smem:[#allocation0]]
  $region86: #{tpu_custom_call.1} parent=0
    _
  %s13 = ssub.s32 1, %s11
  %s14 = scalar_select 0, %s13, %s11
  $region1: #{tpu_custom_call.1} parent=0
    #allocation3 [shape = 'u8[4096]{0}', space=vmem, size = 0x1000, scoped, tag = 'input window, operand 0, single buffered']
    #allocation4 [shape = 's32[1]{0}', space=sflag, size = 0x4, scoped, tag = 'scoped memory for tpu_custom_call.1']
    #allocation5 [shape = 's32[1]{0}', space=sflag, size = 0x4, scoped, tag = 'scoped memory for tpu_custom_call.1']
    #allocation6 [shape = 'u8[65536]{0}', space=vmem, size = 0x10000, scoped, tag = 'input window, operand 1, single buffered']
    #allocation7 [shape = 's32[1]{0}', space=sflag, size = 0x4, scoped, tag = 'scoped memory for tpu_custom_call.1']
    #allocation8 [shape = 'u8[65536]{0}', space=vmem, size = 0x10000, scoped, tag = 'input window, operand 2, single buffered']
    #allocation9 [shape = 'u8[65536]{0}', space=vmem, size = 0x10000, scoped, tag = 'input window, operand 3, single buffered']
    #allocation10 [shape = 's32[1]{0}', space=sflag, size = 0x4, scoped, tag = 'scoped memory for tpu_custom_call.1']
    #allocation11 [shape = 'u8[4096]{0}', space=vmem, size = 0x1000, scoped, tag = 'output window, operand 0, single buffered']
    #allocation12 [shape = 'u8[512]{0}', space=vmem, size = 0x400, scoped, tag = 'output window, operand 1, single buffered']
    #allocation13 [shape = 's32[1]{0}', space=sflag, size = 0x4, scoped, tag = 'scoped memory for tpu_custom_call.1']
    #allocation14 [shape = 'u8[512]{0}', space=vmem, size = 0x400, scoped, tag = 'output window, operand 2, single buffered']
    %15 = vsyncpa [#allocation4], 0
    %16 = vsyncpa [#allocation7], 0
    %17 = vsyncpa [#allocation10], 0
    %18 = vsyncpa [#allocation5], 0
    %19 = vsyncpa [#allocation13], 0
    // Predicated region
    $region2: #{tpu_custom_call.1} parent=1 // pred_check
      _
    $region3: #{tpu_custom_call.1} parent=1 // pred_check_branch
      %21 = sbr.rel (0) target = $region5
    $region4: #{tpu_custom_call.1} parent=1 // pred_region
      %s23 = ssub.s32 128, 128
      %24 = vsyncadd [#allocation4], %s23
      %s26 = sshll.u32 [#allocation3], 4
      %s27 = int_to_ptr.vmem [resolvable:$true] %s26
      %29 = dma.hbm_to_vmem [thread:$0]  %s0, 128, %s27, [#allocation4]
    $region5: #{tpu_custom_call.1} parent=1 // pred_fallthru
      _
    // Predicated region
    $region6: #{tpu_custom_call.1} parent=1 // pred_check
      _
    $region7: #{tpu_custom_call.1} parent=1 // pred_check_branch
      %31 = sbr.rel (0) target = $region9
    $region8: #{tpu_custom_call.1} parent=1 // pred_region
      %s33 = ssub.s32 2048, 2048
      %34 = vsyncadd [#allocation7], %s33
      %s35 = sshll.u32 [#allocation6], 4
      %s36 = int_to_ptr.vmem [resolvable:$true] %s35
      %41 = dma.hbm_to_vmem [thread:$0]  %s1, 2048, %s36, [#allocation7], 128, 128, 8
    $region9: #{tpu_custom_call.1} parent=1 // pred_fallthru
      _
    // Predicated region
    $region10: #{tpu_custom_call.1} parent=1 // pred_check
      _
    $region11: #{tpu_custom_call.1} parent=1 // pred_check_branch
      %43 = sbr.rel (0) target = $region13
    $region12: #{tpu_custom_call.1} parent=1 // pred_region
      %s45 = ssub.s32 2048, 2048
      %46 = vsyncadd [#allocation7], %s45
      %s47 = sshll.u32 [#allocation8], 4
      %s48 = int_to_ptr.vmem [resolvable:$true] %s47
      %53 = dma.hbm_to_vmem [thread:$0]  %s2, 2048, %s48, [#allocation7], 128, 128, 8
    $region13: #{tpu_custom_call.1} parent=1 // pred_fallthru
      _
    // Predicated region
    $region14: #{tpu_custom_call.1} parent=1 // pred_check
      _
    $region15: #{tpu_custom_call.1} parent=1 // pred_check_branch
      %55 = sbr.rel (0) target = $region17
    $region16: #{tpu_custom_call.1} parent=1 // pred_region
      %s57 = ssub.s32 2048, 2048
      %58 = vsyncadd [#allocation10], %s57
      %s59 = sshll.u32 [#allocation9], 4
      %s60 = int_to_ptr.vmem [resolvable:$true] %s59
      %65 = dma.hbm_to_vmem [thread:$0]  %s3, 2048, %s60, [#allocation10], 128, 128, 8
    $region17: #{tpu_custom_call.1} parent=1 // pred_fallthru
      _
    // Predicated region
    $region18: #{tpu_custom_call.1} parent=1 // pred_check
      _
    $region19: #{tpu_custom_call.1} parent=1 // pred_check_branch
      %67 = sbr.rel (0) target = $region21
    $region20: #{tpu_custom_call.1} parent=1 // pred_region
      _
    $region21: #{tpu_custom_call.1} parent=1 // pred_fallthru
      _
    // Predicated region
    $region22: #{tpu_custom_call.1} parent=1 // pred_check
      _
    $region23: #{tpu_custom_call.1} parent=1 // pred_check_branch
      %69 = sbr.rel (0) target = $region25
    $region24: #{tpu_custom_call.1} parent=1 // pred_region
      _
    $region25: #{tpu_custom_call.1} parent=1 // pred_fallthru
      _
    // Predicated region
    $region26: #{tpu_custom_call.1} parent=1 // pred_check
      _
    $region27: #{tpu_custom_call.1} parent=1 // pred_check_branch
      %71 = sbr.rel (0) target = $region29
    $region28: #{tpu_custom_call.1} parent=1 // pred_region
      _
    $region29: #{tpu_custom_call.1} parent=1 // pred_fallthru
      _
    // Predicated region
    $region30: #{tpu_custom_call.1} parent=1 // pred_check
      _
    $region31: #{tpu_custom_call.1} parent=1 // pred_check_branch
      %73 = sbr.rel (0) target = $region33
    $region32: #{tpu_custom_call.1} parent=1 // pred_region
      %74 = dma.done [#allocation4], 128
    $region33: #{tpu_custom_call.1} parent=1 // pred_fallthru
      _
    // Predicated region
    $region34: #{tpu_custom_call.1} parent=1 // pred_check
      _
    $region35: #{tpu_custom_call.1} parent=1 // pred_check_branch
      %76 = sbr.rel (0) target = $region37
    $region36: #{tpu_custom_call.1} parent=1 // pred_region
      %77 = dma.done [#allocation7], 2048
    $region37: #{tpu_custom_call.1} parent=1 // pred_fallthru
      _
    // Predicated region
    $region38: #{tpu_custom_call.1} parent=1 // pred_check
      _
    $region39: #{tpu_custom_call.1} parent=1 // pred_check_branch
      %79 = sbr.rel (0) target = $region41
    $region40: #{tpu_custom_call.1} parent=1 // pred_region
      %80 = dma.done [#allocation7], 2048
    $region41: #{tpu_custom_call.1} parent=1 // pred_fallthru
      _
    // Predicated region
    $region42: #{tpu_custom_call.1} parent=1 // pred_check
      _
    $region43: #{tpu_custom_call.1} parent=1 // pred_check_branch
      %82 = sbr.rel (0) target = $region45
    $region44: #{tpu_custom_call.1} parent=1 // pred_region
      %83 = dma.done [#allocation10], 2048
    $region45: #{tpu_custom_call.1} parent=1 // pred_fallthru
      _
    %v84 = vld [vmem:[#allocation8] sm:$0xff]
    %v85 = vld [vmem:[#allocation8 + $0x8] sm:$0xff]
    %v86 = vld [vmem:[#allocation8 + $0x10] sm:$0xff]
    %v87 = vld [vmem:[#allocation8 + $0x18] sm:$0xff]
    %v88 = vld [vmem:[#allocation8 + $0x20] sm:$0xff]
    %v89 = vld [vmem:[#allocation8 + $0x28] sm:$0xff]
    %v90 = vld [vmem:[#allocation8 + $0x30] sm:$0xff]
    %v91 = vld [vmem:[#allocation8 + $0x38] sm:$0xff]
    %v92 = vld [vmem:[#allocation8 + $0x40] sm:$0xff]
    %v93 = vld [vmem:[#allocation8 + $0x48] sm:$0xff]
    %v94 = vld [vmem:[#allocation8 + $0x50] sm:$0xff]
    %v95 = vld [vmem:[#allocation8 + $0x58] sm:$0xff]
    %v96 = vld [vmem:[#allocation8 + $0x60] sm:$0xff]
    %v97 = vld [vmem:[#allocation8 + $0x68] sm:$0xff]
    %v98 = vld [vmem:[#allocation8 + $0x70] sm:$0xff]
    %v99 = vld [vmem:[#allocation8 + $0x78] sm:$0xff]
    %v100 = vmax.f32 %v84, 0.0
    %v101 = vmax.f32 %v85, 0.0
    %v102 = vmax.f32 %v86, 0.0
    %v103 = vmax.f32 %v87, 0.0
    %v104 = vmax.f32 %v88, 0.0
    %v105 = vmax.f32 %v89, 0.0
    %v106 = vmax.f32 %v90, 0.0
    %v107 = vmax.f32 %v91, 0.0
    %v108 = vmax.f32 %v92, 0.0
    %v109 = vmax.f32 %v93, 0.0
    %v110 = vmax.f32 %v94, 0.0
    %v111 = vmax.f32 %v95, 0.0
    %v112 = vmax.f32 %v96, 0.0
    %v113 = vmax.f32 %v97, 0.0
    %v114 = vmax.f32 %v98, 0.0
    %v115 = vmax.f32 %v99, 0.0
    %v116 = vand.u32 2147483647, %v84
    %v117 = vand.u32 2147483647, %v85
    %v118 = vand.u32 2147483647, %v86
    %v119 = vand.u32 2147483647, %v87
    %v120 = vand.u32 2147483647, %v88
    %v121 = vand.u32 2147483647, %v89
    %v122 = vand.u32 2147483647, %v90
    %v123 = vand.u32 2147483647, %v91
    %v124 = vand.u32 2147483647, %v92
    %v125 = vand.u32 2147483647, %v93
    %v126 = vand.u32 2147483647, %v94
    %v127 = vand.u32 2147483647, %v95
    %v128 = vand.u32 2147483647, %v96
    %v129 = vand.u32 2147483647, %v97
    %v130 = vand.u32 2147483647, %v98
    %v131 = vand.u32 2147483647, %v99
    %v132 = vsub.f32 0.0, %v116
    %v133 = vsub.f32 0.0, %v117
    %v134 = vsub.f32 0.0, %v118
    %v135 = vsub.f32 0.0, %v119
    %v136 = vsub.f32 0.0, %v120
    %v137 = vsub.f32 0.0, %v121
    %v138 = vsub.f32 0.0, %v122
    %v139 = vsub.f32 0.0, %v123
    %v140 = vsub.f32 0.0, %v124
    %v141 = vsub.f32 0.0, %v125
    %v142 = vsub.f32 0.0, %v126
    %v143 = vsub.f32 0.0, %v127
    %v144 = vsub.f32 0.0, %v128
    %v145 = vsub.f32 0.0, %v129
    %v146 = vsub.f32 0.0, %v130
    %v147 = vsub.f32 0.0, %v131
    %v148 = vmul.f32 %v132, 1.442695
    %v149 = vpow.pop %v148
    %v150 = vmul.f32 %v133, 1.442695
    %v151 = vpow.pop %v150
    %v152 = vmul.f32 %v134, 1.442695
    %v153 = vpow.pop %v152
    %v154 = vmul.f32 %v135, 1.442695
    %v155 = vpow.pop %v154
    %v156 = vmul.f32 %v136, 1.442695
    %v157 = vpow.pop %v156
    %v158 = vmul.f32 %v137, 1.442695
    %v159 = vpow.pop %v158
    %v160 = vmul.f32 %v138, 1.442695
    %v161 = vpow.pop %v160
    %v162 = vmul.f32 %v139, 1.442695
    %v163 = vpow.pop %v162
    %v164 = vmul.f32 %v140, 1.442695
    %v165 = vpow.pop %v164
    %v166 = vmul.f32 %v141, 1.442695
    %v167 = vpow.pop %v166
    %v168 = vmul.f32 %v142, 1.442695
    %v169 = vpow.pop %v168
    %v170 = vmul.f32 %v143, 1.442695
    %v171 = vpow.pop %v170
    %v172 = vmul.f32 %v144, 1.442695
    %v173 = vpow.pop %v172
    %v174 = vmul.f32 %v145, 1.442695
    %v175 = vpow.pop %v174
    %v176 = vmul.f32 %v146, 1.442695
    %v177 = vpow.pop %v176
    %v178 = vmul.f32 %v147, 1.442695
    %v179 = vpow.pop %v178
    %v180 = vadd.f32 %v149, 1.0
    %v181 = vlog2.pop %v180
    %v182 = vmul.f32 %v181, 0.6931472
    %v183 = vmul.f32 -0.5, %v149
    %v184 = vadd.f32 %v183, 1.0
    %v185 = vmul.f32 %v184, %v149
    %v186 = vand.u32 2147483647, %v149
    %vm187 = vcmp.lt.f32.partialorder %v186, 0.0004427343
    %v188 = vsel %vm187, %v185, %v182
    %v189 = vadd.f32 %v151, 1.0
    %v190 = vlog2.pop %v189
    %v191 = vmul.f32 %v190, 0.6931472
    %v192 = vmul.f32 -0.5, %v151
    %v193 = vadd.f32 %v192, 1.0
    %v194 = vmul.f32 %v193, %v151
    %v195 = vand.u32 2147483647, %v151
    %vm196 = vcmp.lt.f32.partialorder %v195, 0.0004427343
    %v197 = vsel %vm196, %v194, %v191
    %v198 = vadd.f32 %v153, 1.0
    %v199 = vlog2.pop %v198
    %v200 = vmul.f32 %v199, 0.6931472
    %v201 = vmul.f32 -0.5, %v153
    %v202 = vadd.f32 %v201, 1.0
    %v203 = vmul.f32 %v202, %v153
    %v204 = vand.u32 2147483647, %v153
    %vm205 = vcmp.lt.f32.partialorder %v204, 0.0004427343
    %v206 = vsel %vm205, %v203, %v200
    %v207 = vadd.f32 %v155, 1.0
    %v208 = vlog2.pop %v207
    %v209 = vmul.f32 %v208, 0.6931472
    %v210 = vmul.f32 -0.5, %v155
    %v211 = vadd.f32 %v210, 1.0
    %v212 = vmul.f32 %v211, %v155
    %v213 = vand.u32 2147483647, %v155
    %vm214 = vcmp.lt.f32.partialorder %v213, 0.0004427343
    %v215 = vsel %vm214, %v212, %v209
    %v216 = vadd.f32 %v157, 1.0
    %v217 = vlog2.pop %v216
    %v218 = vmul.f32 %v217, 0.6931472
    %v219 = vmul.f32 -0.5, %v157
    %v220 = vadd.f32 %v219, 1.0
    %v221 = vmul.f32 %v220, %v157
    %v222 = vand.u32 2147483647, %v157
    %vm223 = vcmp.lt.f32.partialorder %v222, 0.0004427343
    %v224 = vsel %vm223, %v221, %v218
    %v225 = vadd.f32 %v159, 1.0
    %v226 = vlog2.pop %v225
    %v227 = vmul.f32 %v226, 0.6931472
    %v228 = vmul.f32 -0.5, %v159
    %v229 = vadd.f32 %v228, 1.0
    %v230 = vmul.f32 %v229, %v159
    %v231 = vand.u32 2147483647, %v159
    %vm232 = vcmp.lt.f32.partialorder %v231, 0.0004427343
    %v233 = vsel %vm232, %v230, %v227
    %v234 = vadd.f32 %v161, 1.0
    %v235 = vlog2.pop %v234
    %v236 = vmul.f32 %v235, 0.6931472
    %v237 = vmul.f32 -0.5, %v161
    %v238 = vadd.f32 %v237, 1.0
    %v239 = vmul.f32 %v238, %v161
    %v240 = vand.u32 2147483647, %v161
    %vm241 = vcmp.lt.f32.partialorder %v240, 0.0004427343
    %v242 = vsel %vm241, %v239, %v236
    %v243 = vadd.f32 %v163, 1.0
    %v244 = vlog2.pop %v243
    %v245 = vmul.f32 %v244, 0.6931472
    %v246 = vmul.f32 -0.5, %v163
    %v247 = vadd.f32 %v246, 1.0
    %v248 = vmul.f32 %v247, %v163
    %v249 = vand.u32 2147483647, %v163
    %vm250 = vcmp.lt.f32.partialorder %v249, 0.0004427343
    %v251 = vsel %vm250, %v248, %v245
    %v252 = vadd.f32 %v165, 1.0
    %v253 = vlog2.pop %v252
    %v254 = vmul.f32 %v253, 0.6931472
    %v255 = vmul.f32 -0.5, %v165
    %v256 = vadd.f32 %v255, 1.0
    %v257 = vmul.f32 %v256, %v165
    %v258 = vand.u32 2147483647, %v165
    %vm259 = vcmp.lt.f32.partialorder %v258, 0.0004427343
    %v260 = vsel %vm259, %v257, %v254
    %v261 = vadd.f32 %v167, 1.0
    %v262 = vlog2.pop %v261
    %v263 = vmul.f32 %v262, 0.6931472
    %v264 = vmul.f32 -0.5, %v167
    %v265 = vadd.f32 %v264, 1.0
    %v266 = vmul.f32 %v265, %v167
    %v267 = vand.u32 2147483647, %v167
    %vm268 = vcmp.lt.f32.partialorder %v267, 0.0004427343
    %v269 = vsel %vm268, %v266, %v263
    %v270 = vadd.f32 %v169, 1.0
    %v271 = vlog2.pop %v270
    %v272 = vmul.f32 %v271, 0.6931472
    %v273 = vmul.f32 -0.5, %v169
    %v274 = vadd.f32 %v273, 1.0
    %v275 = vmul.f32 %v274, %v169
    %v276 = vand.u32 2147483647, %v169
    %vm277 = vcmp.lt.f32.partialorder %v276, 0.0004427343
    %v278 = vsel %vm277, %v275, %v272
    %v279 = vadd.f32 %v171, 1.0
    %v280 = vlog2.pop %v279
    %v281 = vmul.f32 %v280, 0.6931472
    %v282 = vmul.f32 -0.5, %v171
    %v283 = vadd.f32 %v282, 1.0
    %v284 = vmul.f32 %v283, %v171
    %v285 = vand.u32 2147483647, %v171
    %vm286 = vcmp.lt.f32.partialorder %v285, 0.0004427343
    %v287 = vsel %vm286, %v284, %v281
    %v288 = vadd.f32 %v173, 1.0
    %v289 = vlog2.pop %v288
    %v290 = vmul.f32 %v289, 0.6931472
    %v291 = vmul.f32 -0.5, %v173
    %v292 = vadd.f32 %v291, 1.0
    %v293 = vmul.f32 %v292, %v173
    %v294 = vand.u32 2147483647, %v173
    %vm295 = vcmp.lt.f32.partialorder %v294, 0.0004427343
    %v296 = vsel %vm295, %v293, %v290
    %v297 = vadd.f32 %v175, 1.0
    %v298 = vlog2.pop %v297
    %v299 = vmul.f32 %v298, 0.6931472
    %v300 = vmul.f32 -0.5, %v175
    %v301 = vadd.f32 %v300, 1.0
    %v302 = vmul.f32 %v301, %v175
    %v303 = vand.u32 2147483647, %v175
    %vm304 = vcmp.lt.f32.partialorder %v303, 0.0004427343
    %v305 = vsel %vm304, %v302, %v299
    %v306 = vadd.f32 %v177, 1.0
    %v307 = vlog2.pop %v306
    %v308 = vmul.f32 %v307, 0.6931472
    %v309 = vmul.f32 -0.5, %v177
    %v310 = vadd.f32 %v309, 1.0
    %v311 = vmul.f32 %v310, %v177
    %v312 = vand.u32 2147483647, %v177
    %vm313 = vcmp.lt.f32.partialorder %v312, 0.0004427343
    %v314 = vsel %vm313, %v311, %v308
    %v315 = vadd.f32 %v179, 1.0
    %v316 = vlog2.pop %v315
    %v317 = vmul.f32 %v316, 0.6931472
    %v318 = vmul.f32 -0.5, %v179
    %v319 = vadd.f32 %v318, 1.0
    %v320 = vmul.f32 %v319, %v179
    %v321 = vand.u32 2147483647, %v179
    %vm322 = vcmp.lt.f32.partialorder %v321, 0.0004427343
    %v323 = vsel %vm322, %v320, %v317
    %v324 = vadd.f32 %v100, %v188
    %v325 = vadd.f32 %v101, %v197
    %v326 = vadd.f32 %v102, %v206
    %v327 = vadd.f32 %v103, %v215
    %v328 = vadd.f32 %v104, %v224
    %v329 = vadd.f32 %v105, %v233
    %v330 = vadd.f32 %v106, %v242
    %v331 = vadd.f32 %v107, %v251
    %v332 = vadd.f32 %v108, %v260
    %v333 = vadd.f32 %v109, %v269
    %v334 = vadd.f32 %v110, %v278
    %v335 = vadd.f32 %v111, %v287
    %v336 = vadd.f32 %v112, %v296
    %v337 = vadd.f32 %v113, %v305
    %v338 = vadd.f32 %v114, %v314
    %v339 = vadd.f32 %v115, %v323
    %v340 = vld [vmem:[#allocation9] sm:$0xff]
    %v341 = vld [vmem:[#allocation9 + $0x8] sm:$0xff]
    %v342 = vld [vmem:[#allocation9 + $0x10] sm:$0xff]
    %v343 = vld [vmem:[#allocation9 + $0x18] sm:$0xff]
    %v344 = vld [vmem:[#allocation9 + $0x20] sm:$0xff]
    %v345 = vld [vmem:[#allocation9 + $0x28] sm:$0xff]
    %v346 = vld [vmem:[#allocation9 + $0x30] sm:$0xff]
    %v347 = vld [vmem:[#allocation9 + $0x38] sm:$0xff]
    %v348 = vld [vmem:[#allocation9 + $0x40] sm:$0xff]
    %v349 = vld [vmem:[#allocation9 + $0x48] sm:$0xff]
    %v350 = vld [vmem:[#allocation9 + $0x50] sm:$0xff]
    %v351 = vld [vmem:[#allocation9 + $0x58] sm:$0xff]
    %v352 = vld [vmem:[#allocation9 + $0x60] sm:$0xff]
    %v353 = vld [vmem:[#allocation9 + $0x68] sm:$0xff]
    %v354 = vld [vmem:[#allocation9 + $0x70] sm:$0xff]
    %v355 = vld [vmem:[#allocation9 + $0x78] sm:$0xff]
    %v356 = vld [vmem:[#allocation6] sm:$0xff]
    %v357 = vld [vmem:[#allocation6 + $0x8] sm:$0xff]
    %v358 = vld [vmem:[#allocation6 + $0x10] sm:$0xff]
    %v359 = vld [vmem:[#allocation6 + $0x18] sm:$0xff]
    %v360 = vld [vmem:[#allocation6 + $0x20] sm:$0xff]
    %v361 = vld [vmem:[#allocation6 + $0x28] sm:$0xff]
    %v362 = vld [vmem:[#allocation6 + $0x30] sm:$0xff]
    %v363 = vld [vmem:[#allocation6 + $0x38] sm:$0xff]
    %v364 = vld [vmem:[#allocation6 + $0x40] sm:$0xff]
    %v365 = vld [vmem:[#allocation6 + $0x48] sm:$0xff]
    %v366 = vld [vmem:[#allocation6 + $0x50] sm:$0xff]
    %v367 = vld [vmem:[#allocation6 + $0x58] sm:$0xff]
    %v368 = vld [vmem:[#allocation6 + $0x60] sm:$0xff]
    %v369 = vld [vmem:[#allocation6 + $0x68] sm:$0xff]
    %v370 = vld [vmem:[#allocation6 + $0x70] sm:$0xff]
    %v371 = vld [vmem:[#allocation6 + $0x78] sm:$0xff]
    %v372 = vmul.f32 %v340, %v324
    %v373 = vmul.f32 %v341, %v325
    %v374 = vmul.f32 %v342, %v326
    %v375 = vmul.f32 %v343, %v327
    %v376 = vmul.f32 %v344, %v328
    %v377 = vmul.f32 %v345, %v329
    %v378 = vmul.f32 %v346, %v330
    %v379 = vmul.f32 %v347, %v331
    %v380 = vmul.f32 %v348, %v332
    %v381 = vmul.f32 %v349, %v333
    %v382 = vmul.f32 %v350, %v334
    %v383 = vmul.f32 %v351, %v335
    %v384 = vmul.f32 %v352, %v336
    %v385 = vmul.f32 %v353, %v337
    %v386 = vmul.f32 %v354, %v338
    %v387 = vmul.f32 %v355, %v339
    %v388 = vadd.f32 %v356, %v372
    %v389 = vadd.f32 %v357, %v373
    %v390 = vadd.f32 %v358, %v374
    %v391 = vadd.f32 %v359, %v375
    %v392 = vadd.f32 %v360, %v376
    %v393 = vadd.f32 %v361, %v377
    %v394 = vadd.f32 %v362, %v378
    %v395 = vadd.f32 %v363, %v379
    %v396 = vadd.f32 %v364, %v380
    %v397 = vadd.f32 %v365, %v381
    %v398 = vadd.f32 %v366, %v382
    %v399 = vadd.f32 %v367, %v383
    %v400 = vadd.f32 %v368, %v384
    %v401 = vadd.f32 %v369, %v385
    %v402 = vadd.f32 %v370, %v386
    %v403 = vadd.f32 %v371, %v387
    %p404 = scmp.eq.s32.totalorder 0, 0
    // Predicated region
    $region46: #{tpu_custom_call.1} parent=1 // pred_check
      %p405 = pneg %p404
    $region47: #{tpu_custom_call.1} parent=1 // pred_check_branch
      %407 = sbr.rel (%p405) target = $region49
    $region48: #{tpu_custom_call.1} parent=1 // pred_region
      %v408 = vld [vmem:[%s5] sm:$0x1]
      %v409 = vmax.f32 %v408, 0.0
      %v410 = vand.u32 2147483647, %v408
      %v411 = vsub.f32 0.0, %v410
      %v412 = vmul.f32 %v411, 1.442695
      %v413 = vpow.pop %v412
      %v414 = vadd.f32 %v413, 1.0
      %v415 = vlog2.pop %v414
      %v416 = vmul.f32 %v415, 0.6931472
      %v417 = vmul.f32 -0.5, %v413
      %v418 = vadd.f32 %v417, 1.0
      %v419 = vmul.f32 %v418, %v413
      %v420 = vand.u32 2147483647, %v413
      %vm421 = vcmp.lt.f32.partialorder %v420, 0.0004427343
      %v422 = vsel %vm421, %v419, %v416
      %v423 = vadd.f32 %v409, %v422
      %v424 = vld [vmem:[%s6] sm:$0x1]
      %v425 = vld [vmem:[%s4] sm:$0x1]
      %v426 = vmul.f32 %v424, %v423
      %v427 = vadd.f32 %v425, %v426
      %v429 = vlaneseq
      %v430 = vshrl.u32 %v429, 7
      %v431 = vsub.s32 0, %v430
      %v432 = vrot.slane %v427, %v431
      %434 = vst [vmem:[#allocation2] sm:$0xff] %v432
      %v435 = vmul.f32 %v427, 0.5
      %v436 = vmul.f32 %v435, %v427
      %v437 = vmul.f32 %v424, 0.5
      %v438 = vmul.f32 %v437, %v424
      %v439 = vsub.f32 %v436, %v438
      %vm440 = vcmp.gt.f32.partialorder %v408, -15.0
      %v441 = vmax.f32 %v423, 1e-38
      %v442 = vlog2.pop %v441
      %v443 = vmul.f32 %v442, 0.6931472
      %v444 = vsel %vm440, %v443, %v408
      %v445 = vsub.f32 %v439, %v444
      %446 = vst [vmem:[#allocation14] sm:$0x1] %v445
      %447 = vst [vmem:[#allocation12] sm:$0x1] 0.0
    $region49: #{tpu_custom_call.1} parent=1 // pred_fallthru
      _
    %v448 = vld [vmem:[#allocation2] sm:$0xff]
    %v449 = vld [vmem:[#allocation3] sm:$0xff]
    %450 = vmatprep.subr.mxu0 0.0
    %451 = vmatpush1.msra.mxu0 %v403
    %452 = vmatprep.subr.mxu0 0.0
    %453 = vmatpush1.msra.mxu0 %v402
    %454 = vmatprep.subr.mxu0 0.0
    %455 = vmatpush1.msra.mxu0 %v401
    %456 = vmatprep.subr.mxu0 0.0
    %457 = vmatpush1.msra.mxu0 %v400
    %458 = vmatprep.subr.mxu0 0.0
    %459 = vmatpush1.msra.mxu0 %v399
    %460 = vmatprep.subr.mxu0 0.0
    %461 = vmatpush1.msra.mxu0 %v398
    %462 = vmatprep.subr.mxu0 0.0
    %463 = vmatpush1.msra.mxu0 %v397
    %464 = vmatprep.subr.mxu0 0.0
    %465 = vmatpush1.msra.mxu0 %v396
    %466 = vmatprep.subr.mxu0 0.0
    %467 = vmatpush1.msra.mxu0 %v395
    %468 = vmatprep.subr.mxu0 0.0
    %469 = vmatpush1.msra.mxu0 %v394
    %470 = vmatprep.subr.mxu0 0.0
    %471 = vmatpush1.msra.mxu0 %v393
    %472 = vmatprep.subr.mxu0 0.0
    %473 = vmatpush1.msra.mxu0 %v392
    %474 = vmatprep.subr.mxu0 0.0
    %475 = vmatpush1.msra.mxu0 %v391
    %476 = vmatprep.subr.mxu0 0.0
    %477 = vmatpush1.msra.mxu0 %v390
    %478 = vmatprep.subr.mxu0 0.0
    %479 = vmatpush1.msra.mxu0 %v389
    %480 = vmatprep.subr.mxu0 0.0
    %481 = vmatpush1.msra.mxu0 %v388
    %482 = vmatprep.subr.mxu0 0.0
    %483 = vmatpush2.msra.mxu0 0.0
    %484 = vmatprep.subr.mxu0 0.0
    %485 = vmatpush2.msra.mxu0 0.0
    %486 = vmatprep.subr.mxu0 0.0
    %487 = vmatpush2.msra.mxu0 0.0
    %488 = vmatprep.subr.mxu0 0.0
    %489 = vmatpush2.msra.mxu0 0.0
    %490 = vmatprep.subr.mxu0 0.0
    %491 = vmatpush2.msra.mxu0 0.0
    %492 = vmatprep.subr.mxu0 0.0
    %493 = vmatpush2.msra.mxu0 0.0
    %494 = vmatprep.subr.mxu0 0.0
    %495 = vmatpush2.msra.mxu0 0.0
    %496 = vmatprep.subr.mxu0 0.0
    %497 = vmatpush2.msra.mxu0 0.0
    %498 = vmatprep.subr.mxu0 0.0
    %499 = vmatpush2.msra.mxu0 0.0
    %500 = vmatprep.subr.mxu0 0.0
    %501 = vmatpush2.msra.mxu0 0.0
    %502 = vmatprep.subr.mxu0 0.0
    %503 = vmatpush2.msra.mxu0 0.0
    %504 = vmatprep.subr.mxu0 0.0
    %505 = vmatpush2.msra.mxu0 0.0
    %506 = vmatprep.subr.mxu0 0.0
    %507 = vmatpush2.msra.mxu0 0.0
    %508 = vmatprep.subr.mxu0 0.0
    %509 = vmatpush2.msra.mxu0 0.0
    %510 = vmatprep.subr.mxu0 0.0
    %511 = vmatpush2.msra.mxu0 0.0
    %512 = vmatprep.subr.mxu0 0.0
    %513 = vmatpush2.msra.mxu0 0.0
    %514 = vmatprep.mubr.f32.mxu0 0.0
    %515 = vmatmul.mubr.f32.gmra.mxu0 %v449
    %v516 = vpop.f32.mrf.mxu0
    %v517 = vadd.f32 0.0, %v516
    %v518 = vpop.f32.mrf.mxu0
    %519 = vdwg.mxu0
    %v520 = vadd.f32 %v448, %v517
    %521 = vst [vmem:[#allocation2] sm:$0xff] %v520
    // Predicated region
    $region50: #{tpu_custom_call.1} parent=1 // pred_check
      %p522 = pneg %p404
    $region51: #{tpu_custom_call.1} parent=1 // pred_check_branch
      %524 = sbr.rel (%p522) target = $region53
    $region52: #{tpu_custom_call.1} parent=1 // pred_region
      %v525 = vld [vmem:[#allocation2] sm:$0xff]
      %526 = vst [vmem:[#allocation11] sm:$0xff] %v525
    $region53: #{tpu_custom_call.1} parent=1 // pred_fallthru
      _
    %v527 = vmul.f32 %v388, 0.5
    %v528 = vmul.f32 %v389, 0.5
    %v529 = vmul.f32 %v390, 0.5
    %v530 = vmul.f32 %v391, 0.5
    %v531 = vmul.f32 %v392, 0.5
    %v532 = vmul.f32 %v393, 0.5
    %v533 = vmul.f32 %v394, 0.5
    %v534 = vmul.f32 %v395, 0.5
    %v535 = vmul.f32 %v396, 0.5
    %v536 = vmul.f32 %v397, 0.5
    %v537 = vmul.f32 %v398, 0.5
    %v538 = vmul.f32 %v399, 0.5
    %v539 = vmul.f32 %v400, 0.5
    %v540 = vmul.f32 %v401, 0.5
    %v541 = vmul.f32 %v402, 0.5
    %v542 = vmul.f32 %v403, 0.5
    %v543 = vmul.f32 %v527, %v388
    %v544 = vmul.f32 %v528, %v389
    %v545 = vmul.f32 %v529, %v390
    %v546 = vmul.f32 %v530, %v391
    %v547 = vmul.f32 %v531, %v392
    %v548 = vmul.f32 %v532, %v393
    %v549 = vmul.f32 %v533, %v394
    %v550 = vmul.f32 %v534, %v395
    %v551 = vmul.f32 %v535, %v396
    %v552 = vmul.f32 %v536, %v397
    %v553 = vmul.f32 %v537, %v398
    %v554 = vmul.f32 %v538, %v399
    %v555 = vmul.f32 %v539, %v400
    %v556 = vmul.f32 %v540, %v401
    %v557 = vmul.f32 %v541, %v402
    %v558 = vmul.f32 %v542, %v403
    %v559 = vmul.f32 %v340, 0.5
    %v560 = vmul.f32 %v341, 0.5
    %v561 = vmul.f32 %v342, 0.5
    %v562 = vmul.f32 %v343, 0.5
    %v563 = vmul.f32 %v344, 0.5
    %v564 = vmul.f32 %v345, 0.5
    %v565 = vmul.f32 %v346, 0.5
    %v566 = vmul.f32 %v347, 0.5
    %v567 = vmul.f32 %v348, 0.5
    %v568 = vmul.f32 %v349, 0.5
    %v569 = vmul.f32 %v350, 0.5
    %v570 = vmul.f32 %v351, 0.5
    %v571 = vmul.f32 %v352, 0.5
    %v572 = vmul.f32 %v353, 0.5
    %v573 = vmul.f32 %v354, 0.5
    %v574 = vmul.f32 %v355, 0.5
    %v575 = vmul.f32 %v559, %v340
    %v576 = vmul.f32 %v560, %v341
    %v577 = vmul.f32 %v561, %v342
    %v578 = vmul.f32 %v562, %v343
    %v579 = vmul.f32 %v563, %v344
    %v580 = vmul.f32 %v564, %v345
    %v581 = vmul.f32 %v565, %v346
    %v582 = vmul.f32 %v566, %v347
    %v583 = vmul.f32 %v567, %v348
    %v584 = vmul.f32 %v568, %v349
    %v585 = vmul.f32 %v569, %v350
    %v586 = vmul.f32 %v570, %v351
    %v587 = vmul.f32 %v571, %v352
    %v588 = vmul.f32 %v572, %v353
    %v589 = vmul.f32 %v573, %v354
    %v590 = vmul.f32 %v574, %v355
    %v591 = vsub.f32 %v543, %v575
    %v592 = vsub.f32 %v544, %v576
    %v593 = vsub.f32 %v545, %v577
    %v594 = vsub.f32 %v546, %v578
    %v595 = vsub.f32 %v547, %v579
    %v596 = vsub.f32 %v548, %v580
    %v597 = vsub.f32 %v549, %v581
    %v598 = vsub.f32 %v550, %v582
    %v599 = vsub.f32 %v551, %v583
    %v600 = vsub.f32 %v552, %v584
    %v601 = vsub.f32 %v553, %v585
    %v602 = vsub.f32 %v554, %v586
    %v603 = vsub.f32 %v555, %v587
    %v604 = vsub.f32 %v556, %v588
    %v605 = vsub.f32 %v557, %v589
    %v606 = vsub.f32 %v558, %v590
    %vm607 = vcmp.gt.f32.partialorder %v84, -15.0
    %vm608 = vcmp.gt.f32.partialorder %v85, -15.0
    %vm609 = vcmp.gt.f32.partialorder %v86, -15.0
    %vm610 = vcmp.gt.f32.partialorder %v87, -15.0
    %vm611 = vcmp.gt.f32.partialorder %v88, -15.0
    %vm612 = vcmp.gt.f32.partialorder %v89, -15.0
    %vm613 = vcmp.gt.f32.partialorder %v90, -15.0
    %vm614 = vcmp.gt.f32.partialorder %v91, -15.0
    %vm615 = vcmp.gt.f32.partialorder %v92, -15.0
    %vm616 = vcmp.gt.f32.partialorder %v93, -15.0
    %vm617 = vcmp.gt.f32.partialorder %v94, -15.0
    %vm618 = vcmp.gt.f32.partialorder %v95, -15.0
    %vm619 = vcmp.gt.f32.partialorder %v96, -15.0
    %vm620 = vcmp.gt.f32.partialorder %v97, -15.0
    %vm621 = vcmp.gt.f32.partialorder %v98, -15.0
    %vm622 = vcmp.gt.f32.partialorder %v99, -15.0
    %v623 = vmax.f32 %v324, 1e-38
    %v624 = vmax.f32 %v325, 1e-38
    %v625 = vmax.f32 %v326, 1e-38
    %v626 = vmax.f32 %v327, 1e-38
    %v627 = vmax.f32 %v328, 1e-38
    %v628 = vmax.f32 %v329, 1e-38
    %v629 = vmax.f32 %v330, 1e-38
    %v630 = vmax.f32 %v331, 1e-38
    %v631 = vmax.f32 %v332, 1e-38
    %v632 = vmax.f32 %v333, 1e-38
    %v633 = vmax.f32 %v334, 1e-38
    %v634 = vmax.f32 %v335, 1e-38
    %v635 = vmax.f32 %v336, 1e-38
    %v636 = vmax.f32 %v337, 1e-38
    %v637 = vmax.f32 %v338, 1e-38
    %v638 = vmax.f32 %v339, 1e-38
    %v639 = vlog2.pop %v623
    %v640 = vmul.f32 %v639, 0.6931472
    %v641 = vlog2.pop %v624
    %v642 = vmul.f32 %v641, 0.6931472
    %v643 = vlog2.pop %v625
    %v644 = vmul.f32 %v643, 0.6931472
    %v645 = vlog2.pop %v626
    %v646 = vmul.f32 %v645, 0.6931472
    %v647 = vlog2.pop %v627
    %v648 = vmul.f32 %v647, 0.6931472
    %v649 = vlog2.pop %v628
    %v650 = vmul.f32 %v649, 0.6931472
    %v651 = vlog2.pop %v629
    %v652 = vmul.f32 %v651, 0.6931472
    %v653 = vlog2.pop %v630
    %v654 = vmul.f32 %v653, 0.6931472
    %v655 = vlog2.pop %v631
    %v656 = vmul.f32 %v655, 0.6931472
    %v657 = vlog2.pop %v632
    %v658 = vmul.f32 %v657, 0.6931472
    %v659 = vlog2.pop %v633
    %v660 = vmul.f32 %v659, 0.6931472
    %v661 = vlog2.pop %v634
    %v662 = vmul.f32 %v661, 0.6931472
    %v663 = vlog2.pop %v635
    %v664 = vmul.f32 %v663, 0.6931472
    %v665 = vlog2.pop %v636
    %v666 = vmul.f32 %v665, 0.6931472
    %v667 = vlog2.pop %v637
    %v668 = vmul.f32 %v667, 0.6931472
    %v669 = vlog2.pop %v638
    %v670 = vmul.f32 %v669, 0.6931472
    %v671 = vsel %vm607, %v640, %v84
    %v672 = vsel %vm608, %v642, %v85
    %v673 = vsel %vm609, %v644, %v86
    %v674 = vsel %vm610, %v646, %v87
    %v675 = vsel %vm611, %v648, %v88
    %v676 = vsel %vm612, %v650, %v89
    %v677 = vsel %vm613, %v652, %v90
    %v678 = vsel %vm614, %v654, %v91
    %v679 = vsel %vm615, %v656, %v92
    %v680 = vsel %vm616, %v658, %v93
    %v681 = vsel %vm617, %v660, %v94
    %v682 = vsel %vm618, %v662, %v95
    %v683 = vsel %vm619, %v664, %v96
    %v684 = vsel %vm620, %v666, %v97
    %v685 = vsel %vm621, %v668, %v98
    %v686 = vsel %vm622, %v670, %v99
    %v687 = vsub.f32 %v591, %v671
    %v688 = vsub.f32 %v592, %v672
    %v689 = vsub.f32 %v593, %v673
    %v690 = vsub.f32 %v594, %v674
    %v691 = vsub.f32 %v595, %v675
    %v692 = vsub.f32 %v596, %v676
    %v693 = vsub.f32 %v597, %v677
    %v694 = vsub.f32 %v598, %v678
    %v695 = vsub.f32 %v599, %v679
    %v696 = vsub.f32 %v600, %v680
    %v697 = vsub.f32 %v601, %v681
    %v698 = vsub.f32 %v602, %v682
    %v699 = vsub.f32 %v603, %v683
    %v700 = vsub.f32 %v604, %v684
    %v701 = vsub.f32 %v605, %v685
    %v702 = vsub.f32 %v606, %v686
    // Predicated region
    $region54: #{tpu_custom_call.1} parent=1 // pred_check
      %p703 = pneg %p404
    $region55: #{tpu_custom_call.1} parent=1 // pred_check_branch
      %705 = sbr.rel (%p703) target = $region57
    $region56: #{tpu_custom_call.1} parent=1 // pred_region
      %v706 = vlaneseq
      %v707 = vshrl.u32 %v706, 7
      %v708 = vadd.s32 %v707, 8
      %v709 = vadd.s32 %v707, 16
      %v710 = vadd.s32 %v707, 24
      %v711 = vadd.s32 %v707, 32
      %v712 = vadd.s32 %v707, 40
      %v713 = vadd.s32 %v707, 48
      %v714 = vadd.s32 %v707, 56
      %v715 = vadd.s32 %v707, 64
      %v716 = vadd.s32 %v707, 72
      %v717 = vadd.s32 %v707, 80
      %v718 = vadd.s32 %v707, 88
      %v719 = vadd.s32 %v707, 96
      %v720 = vadd.s32 %v707, 104
      %v721 = vadd.s32 %v707, 112
      %v722 = vadd.s32 %v707, 120
      %s723 = smul.u32 0, 128
      %v724 = vstv %s723
      %v725 = vadd.s32 %v707, %v724
      %v726 = vadd.s32 %v708, %v724
      %v727 = vadd.s32 %v709, %v724
      %v728 = vadd.s32 %v710, %v724
      %v729 = vadd.s32 %v711, %v724
      %v730 = vadd.s32 %v712, %v724
      %v731 = vadd.s32 %v713, %v724
      %v732 = vadd.s32 %v714, %v724
      %v733 = vadd.s32 %v715, %v724
      %v734 = vadd.s32 %v716, %v724
      %v735 = vadd.s32 %v717, %v724
      %v736 = vadd.s32 %v718, %v724
      %v737 = vadd.s32 %v719, %v724
      %v738 = vadd.s32 %v720, %v724
      %v739 = vadd.s32 %v721, %v724
      %v740 = vadd.s32 %v722, %v724
      %vm741 = vcmp.lt.s32.totalorder %v725, 32
      %vm742 = vcmp.lt.s32.totalorder %v726, 32
      %vm743 = vcmp.lt.s32.totalorder %v727, 32
      %vm744 = vcmp.lt.s32.totalorder %v728, 32
      %vm745 = vcmp.lt.s32.totalorder %v729, 32
      %vm746 = vcmp.lt.s32.totalorder %v730, 32
      %vm747 = vcmp.lt.s32.totalorder %v731, 32
      %vm748 = vcmp.lt.s32.totalorder %v732, 32
      %vm749 = vcmp.lt.s32.totalorder %v733, 32
      %vm750 = vcmp.lt.s32.totalorder %v734, 32
      %vm751 = vcmp.lt.s32.totalorder %v735, 32
      %vm752 = vcmp.lt.s32.totalorder %v736, 32
      %vm753 = vcmp.lt.s32.totalorder %v737, 32
      %vm754 = vcmp.lt.s32.totalorder %v738, 32
      %vm755 = vcmp.lt.s32.totalorder %v739, 32
      %vm756 = vcmp.lt.s32.totalorder %v740, 32
      %v757 = vsel %vm741, %v687, 0.0
      %v758 = vsel %vm742, %v688, 0.0
      %v759 = vsel %vm743, %v689, 0.0
      %v760 = vsel %vm744, %v690, 0.0
      %v761 = vsel %vm745, %v691, 0.0
      %v762 = vsel %vm746, %v692, 0.0
      %v763 = vsel %vm747, %v693, 0.0
      %v764 = vsel %vm748, %v694, 0.0
      %v765 = vsel %vm749, %v695, 0.0
      %v766 = vsel %vm750, %v696, 0.0
      %v767 = vsel %vm751, %v697, 0.0
      %v768 = vsel %vm752, %v698, 0.0
      %v769 = vsel %vm753, %v699, 0.0
      %v770 = vsel %vm754, %v700, 0.0
      %v771 = vsel %vm755, %v701, 0.0
      %v772 = vsel %vm756, %v702, 0.0
      %v773 = vld [vmem:[#allocation12] sm:$0x1]
      %v774 = vadd.f32 %v757, %v758
      %v775 = vadd.f32 %v774, %v759
      %v776 = vadd.f32 %v775, %v760
      %v777 = vadd.f32 %v776, %v761
      %v778 = vadd.f32 %v777, %v762
      %v779 = vadd.f32 %v778, %v763
      %v780 = vadd.f32 %v779, %v764
      %v781 = vadd.f32 %v780, %v765
      %v782 = vadd.f32 %v781, %v766
      %v783 = vadd.f32 %v782, %v767
      %v784 = vadd.f32 %v783, %v768
      %v785 = vadd.f32 %v784, %v769
      %v786 = vadd.f32 %v785, %v770
      %v787 = vadd.f32 %v786, %v771
      %v788 = vadd.f32 %v787, %v772
      %v789 = vrot.slane %v788, 4
      %v790 = vadd.f32 %v788, %v789
      %v791 = vrot.slane %v790, 2
      %v792 = vadd.f32 %v790, %v791
      %v793 = vrot.slane %v792, 1
      %v794 = vadd.f32 %v792, %v793
      %v795 = vadd.f32 %v773, %v794
      %796 = vst [vmem:[#allocation12] sm:$0x1] %v795
    $region57: #{tpu_custom_call.1} parent=1 // pred_fallthru
      _
    %p797 = scmp.lt.s32.totalorder 0, 0
    // Predicated region
    $region58: #{tpu_custom_call.1} parent=1 // pred_check
      %p798 = pneg %p797
    $region59: #{tpu_custom_call.1} parent=1 // pred_check_branch
      %800 = sbr.rel (%p798) target = $region61
    $region60: #{tpu_custom_call.1} parent=1 // pred_region
      %v801 = vld [vmem:[#allocation12] sm:$0x1]
      %v802 = vadd.f32 %v687, %v688
      %v803 = vadd.f32 %v802, %v689
      %v804 = vadd.f32 %v803, %v690
      %v805 = vadd.f32 %v804, %v691
      %v806 = vadd.f32 %v805, %v692
      %v807 = vadd.f32 %v806, %v693
      %v808 = vadd.f32 %v807, %v694
      %v809 = vadd.f32 %v808, %v695
      %v810 = vadd.f32 %v809, %v696
      %v811 = vadd.f32 %v810, %v697
      %v812 = vadd.f32 %v811, %v698
      %v813 = vadd.f32 %v812, %v699
      %v814 = vadd.f32 %v813, %v700
      %v815 = vadd.f32 %v814, %v701
      %v816 = vadd.f32 %v815, %v702
      %v817 = vrot.slane %v816, 4
      %v818 = vadd.f32 %v816, %v817
      %v819 = vrot.slane %v818, 2
      %v820 = vadd.f32 %v818, %v819
      %v821 = vrot.slane %v820, 1
      %v822 = vadd.f32 %v820, %v821
      %v823 = vadd.f32 %v801, %v822
      %824 = vst [vmem:[#allocation12] sm:$0x1] %v823
    $region61: #{tpu_custom_call.1} parent=1 // pred_fallthru
      _
    // Predicated region
    $region62: #{tpu_custom_call.1} parent=1 // pred_check
      _
    $region63: #{tpu_custom_call.1} parent=1 // pred_check_branch
      %826 = sbr.rel (0) target = $region65
    $region64: #{tpu_custom_call.1} parent=1 // pred_region
      %s828 = ssub.s32 128, 128
      %829 = vsyncadd [#allocation5], %s828
      %s831 = sshll.u32 [#allocation11], 4
      %s832 = int_to_ptr.vmem [resolvable:$true] %s831
      %834 = dma.vmem_to_hbm [thread:$0]  %s832, 128, %s7, [#allocation5]
    $region65: #{tpu_custom_call.1} parent=1 // pred_fallthru
      _
    // Predicated region
    $region66: #{tpu_custom_call.1} parent=1 // pred_check
      _
    $region67: #{tpu_custom_call.1} parent=1 // pred_check_branch
      %836 = sbr.rel (0) target = $region69
    $region68: #{tpu_custom_call.1} parent=1 // pred_region
      %s838 = ssub.s32 16, 16
      %839 = vsyncadd [#allocation13], %s838
      %s841 = sshll.u32 [#allocation12], 4
      %s842 = int_to_ptr.vmem [resolvable:$true] %s841
      %844 = dma.vmem_to_hbm [thread:$0]  %s842, 16, %s8, [#allocation13]
    $region69: #{tpu_custom_call.1} parent=1 // pred_fallthru
      _
    // Predicated region
    $region70: #{tpu_custom_call.1} parent=1 // pred_check
      _
    $region71: #{tpu_custom_call.1} parent=1 // pred_check_branch
      %846 = sbr.rel (0) target = $region73
    $region72: #{tpu_custom_call.1} parent=1 // pred_region
      %s848 = ssub.s32 16, 16
      %849 = vsyncadd [#allocation13], %s848
      %s851 = sshll.u32 [#allocation14], 4
      %s852 = int_to_ptr.vmem [resolvable:$true] %s851
      %854 = dma.vmem_to_hbm [thread:$0]  %s852, 16, %s9, [#allocation13]
    $region73: #{tpu_custom_call.1} parent=1 // pred_fallthru
      _
    // Predicated region
    $region74: #{tpu_custom_call.1} parent=1 // pred_check
      _
    $region75: #{tpu_custom_call.1} parent=1 // pred_check_branch
      %856 = sbr.rel (0) target = $region77
    $region76: #{tpu_custom_call.1} parent=1 // pred_region
      %857 = dma.done [#allocation5], 128
    $region77: #{tpu_custom_call.1} parent=1 // pred_fallthru
      _
    // Predicated region
    $region78: #{tpu_custom_call.1} parent=1 // pred_check
      _
    $region79: #{tpu_custom_call.1} parent=1 // pred_check_branch
      %859 = sbr.rel (0) target = $region81
    $region80: #{tpu_custom_call.1} parent=1 // pred_region
      %860 = dma.done [#allocation13], 16
    $region81: #{tpu_custom_call.1} parent=1 // pred_fallthru
      _
    // Predicated region
    $region82: #{tpu_custom_call.1} parent=1 // pred_check
      _
    $region83: #{tpu_custom_call.1} parent=1 // pred_check_branch
      %862 = sbr.rel (0) target = $region85
    $region84: #{tpu_custom_call.1} parent=1 // pred_region
      %863 = dma.done [#allocation13], 16
    $region85: #{tpu_custom_call.1} parent=1 // pred_fallthru
      _
    %864 = vsyncpa [#allocation4], 1
    %865 = vsyncpa [#allocation7], 1
    %866 = vsyncpa [#allocation10], 1
    %867 = vsyncpa [#allocation5], 1
    %868 = vsyncpa [#allocation13], 1

</llo_original>
